<compile_context>
chip_gen: v6e
topology: v6e:2x2x1
jax: 0.10.0
libtpu: 0.0.40
codegen_flags: <defaults>
</compile_context>

<pallas_src>
import jax
import jax.numpy as jnp
from jax.experimental import pallas as pl
from jax.experimental.pallas import tpu as pltpu

K = 9   # kernel_size
P = 4   # padding = (K - 1) // 2  -> 'same'


def _tap(v, shift, posmod, length):
    """result[:, p] = v[:, p - shift] when that source index stays inside the
    same length-`length` item, else 0.  `shift` is a static Python int."""
    if shift == 0:
        return v
    # Static-shift roll lowers to a concat of two lane slices.
    # TODO(synk): switch to pltpu.roll (XLU slot, frees VPU/load path) once the
    # rotation direction is verified on the target toolchain.
    r = jnp.roll(v, shift, axis=-1)
    if shift > 0:
        keep = posmod >= shift
    else:
        keep = posmod < (length + shift)
    return jnp.where(keep, r, jnp.array(0, r.dtype))


def _double_conv_kernel(x_ref, w1_ref, b1_ref, w2_ref, b2_ref, o_ref):
    # x_ref:  (B_blk, C_in, L)        input dtype (cast to bf16 once in-kernel)
    # w1_ref: (C_mid, K*C_in)   bf16  BN1 scale folded in
    # b1_ref: (C_mid, 1)        f32   BN1 shift
    # w2_ref: (C_out, K*C_mid)  bf16  BN2 scale folded in
    # b2_ref: (C_out, 1)        f32   BN2 shift
    # o_ref:  (B_blk, C_out, L)
    b_blk, _, L = o_ref.shape
    NL = b_blk * L

    # Fold the batch block into the lane (matmul-N) axis: (C_in, b_blk*L).
    if b_blk == 1:
        x2d = x_ref[0]
    else:
        x2d = jnp.concatenate([x_ref[b] for b in range(b_blk)], axis=-1)
    x2d = x2d.astype(jnp.bfloat16)      # single small cast; bf16 im2col after

    # Lane position within each item: masks the per-item 'same' padding and
    # keeps folded batch items independent.
    posmod = jax.lax.broadcasted_iota(jnp.int32, (1, NL), 1) % L

    # conv1 as one MXU matmul over contraction depth K*C_in.
    cols = jnp.concatenate(
        [_tap(x2d, P - k, posmod, L) for k in range(K)], axis=0)   # (K*C_in, NL) bf16
    h = jnp.dot(w1_ref[...], cols,
                preferred_element_type=jnp.float32)                # (C_mid, NL) f32
    h = jnp.maximum(h + b1_ref[...], 0.0)                          # BN1 shift + ReLU
    h = h.astype(jnp.bfloat16)                                     # cast BEFORE im2col

    # conv2: re-"pad" in registers via the same masked lane shifts.
    cols2 = jnp.concatenate(
        [_tap(h, P - k, posmod, L) for k in range(K)], axis=0)     # (K*C_mid, NL) bf16
    y = jnp.dot(w2_ref[...], cols2,
                preferred_element_type=jnp.float32)                # (C_out, NL) f32
    y = jnp.maximum(y + b2_ref[...], 0.0)                          # BN2 shift + ReLU

    # Lane-dense stores (L a multiple of 128 -> unmasked vst).
    if b_blk == 1:
        o_ref[0] = y.astype(o_ref.dtype)
    else:
        for b in range(b_blk):
            o_ref[b] = y[:, b * L:(b + 1) * L].astype(o_ref.dtype)


def _pick_batch_block(batch, length, target_lanes=1024):
    """Largest divisor of `batch` such that (a) the grid has >= 2 steps when
    batch >= 2 (both v7x TensorCores get work) and (b) the folded matmul N
    (b_blk * length) stays around `target_lanes`."""
    if batch <= 1:
        return max(batch, 1)
    max_blk = max(1, batch // 2)                                   # grid >= 2
    max_blk = min(max_blk, max(1, target_lanes // max(length, 1)))
    for cand in range(max_blk, 0, -1):
        if batch % cand == 0:
            return cand
    return 1


def double_conv_pallas(x, w1, scale1, shift1, w2, scale2, shift2):
    """DoubleConv forward (eval-mode BN folded into scale/shift).

    x:  (B, C_in, L)          w1: (C_mid, C_in, K)   w2: (C_out, C_mid, K)
    scale*/shift*: per-channel folded BatchNorm affine.
    """
    B, C_in, L = x.shape
    C_mid = w1.shape[0]
    C_out = w2.shape[0]

    # One-time glue (plain JAX, tiny arrays): fold BN scale into weights,
    # reorder to (C_out, K*C_in) matching the kernel's tap-major im2col rows,
    # cast to bf16.  No input padding and no input cast in the wrapper --
    # the kernel reads x straight from HBM.
    w1_mat = ((w1 * scale1[:, None, None])
              .transpose(0, 2, 1).reshape(C_mid, K * C_in)).astype(jnp.bfloat16)
    w2_mat = ((w2 * scale2[:, None, None])
              .transpose(0, 2, 1).reshape(C_out, K * C_mid)).astype(jnp.bfloat16)
    b1 = shift1.reshape(C_mid, 1).astype(jnp.float32)
    b2 = shift2.reshape(C_out, 1).astype(jnp.float32)

    b_blk = _pick_batch_block(B, L)
    grid = (B // b_blk,)

    # TODO(synk): for production shapes, (a) add an L-tiling grid axis with a
    # 2P halo sized for v7x's 64 MiB VMEM, (b) switch to K accumulated
    # (C_out, C) x (C, L_tile) matmuls once C_in/C_mid >= ~128 (contraction
    # already fills the MXU there, im2col only costs footprint), (c) single-
    # buffer the constant weight blocks (pipeline_mode=pl.Buffered(1)) and pad
    # K*C up to a sublane-tile multiple.
    return pl.pallas_call(
        _double_conv_kernel,
        out_shape=jax.ShapeDtypeStruct((B, C_out, L), x.dtype),
        grid_spec=pltpu.PrefetchScalarGridSpec(
            num_scalar_prefetch=0,
            grid=grid,
            in_specs=[
                pl.BlockSpec((b_blk, C_in, L), lambda i: (i, 0, 0)),
                pl.BlockSpec((C_mid, K * C_in), lambda i: (0, 0)),
                pl.BlockSpec((C_mid, 1), lambda i: (0, 0)),
                pl.BlockSpec((C_out, K * C_mid), lambda i: (0, 0)),
                pl.BlockSpec((C_out, 1), lambda i: (0, 0)),
            ],
            out_specs=pl.BlockSpec((b_blk, C_out, L), lambda i: (i, 0, 0)),
        ),
        compiler_params=pltpu.CompilerParams(
            dimension_semantics=("parallel",)),
    )(x, w1_mat, b1, w2_mat, b2)


def _conv1d_ref(x, w):
    return jax.lax.conv_general_dilated(
        x, w, window_strides=(1,), padding=((P, P),),
        dimension_numbers=("NCH", "OIH", "NCH"),
        preferred_element_type=jnp.float32)


def double_conv_ref(x, w1, scale1, shift1, w2, scale2, shift2):
    # Mirrors the kernel's numerics: BN scale folded into weights, bf16 matmul
    # operands, f32 accumulation, shift + ReLU in f32, bf16 intermediate.
    w1s = (w1 * scale1[:, None, None]).astype(jnp.bfloat16)
    w2s = (w2 * scale2[:, None, None]).astype(jnp.bfloat16)
    h = _conv1d_ref(x.astype(jnp.bfloat16), w1s)
    h = jnp.maximum(h + shift1[None, :, None], 0.0)
    y = _conv1d_ref(h.astype(jnp.bfloat16), w2s)
    y = jnp.maximum(y + shift2[None, :, None], 0.0)
    return y.astype(x.dtype)


def fold_bn(gamma, beta, mean, var, eps=1e-5):
    scale = gamma / jnp.sqrt(var + eps)
    shift = beta - mean * scale
    return scale, shift


if __name__ == "__main__":
    B, C_in, C_out, L = 2, 4, 8, 128
    C_mid = C_out  # mid_channels defaults to out_channels

    key = jax.random.PRNGKey(0)
    keys = jax.random.split(key, 9)

    x = jax.random.normal(keys[0], (B, C_in, L), jnp.float32)

    # Conv weights (bias=False), PyTorch layout (out, in, kernel).
    w1 = jax.random.normal(keys[1], (C_mid, C_in, K), jnp.float32) * 0.1
    w2 = jax.random.normal(keys[2], (C_out, C_mid, K), jnp.float32) * 0.1

    # Deterministic, non-trivial eval-mode BatchNorm parameters.
    g1 = 1.0 + 0.1 * jax.random.normal(keys[3], (C_mid,), jnp.float32)
    be1 = 0.1 * jax.random.normal(keys[4], (C_mid,), jnp.float32)
    m1 = 0.1 * jax.random.normal(keys[5], (C_mid,), jnp.float32)
    v1 = 1.0 + 0.1 * jax.random.uniform(keys[6], (C_mid,), jnp.float32)
    g2 = 1.0 + 0.1 * jax.random.normal(keys[7], (C_out,), jnp.float32)
    be2 = 0.1 * jax.random.normal(keys[8], (C_out,), jnp.float32)
    m2 = jnp.zeros((C_out,), jnp.float32)
    v2 = jnp.ones((C_out,), jnp.float32)

    s1, sh1 = fold_bn(g1, be1, m1, v1)
    s2, sh2 = fold_bn(g2, be2, m2, v2)

    out = double_conv_pallas(x, w1, s1, sh1, w2, s2, sh2)
    out = jax.block_until_ready(out)

    ref = double_conv_ref(x, w1, s1, sh1, w2, s2, sh2)
    assert out.shape == (B, C_out, L), out.shape
    err = float(jnp.max(jnp.abs(out - ref)))
    assert jnp.allclose(out, ref, atol=2e-2, rtol=2e-2), err

    print("KERNEL_OK")
</pallas_src>

<mosaic_0001>
module attributes {stable_mosaic.version = 11 : i64} {
  func.func @_double_conv_kernel(%arg0: i32, %arg1: memref<1x4x128xf32, #tpu.memory_space<vmem>>, %arg2: memref<8x36xbf16, #tpu.memory_space<vmem>>, %arg3: memref<8x1xf32, #tpu.memory_space<vmem>>, %arg4: memref<8x72xbf16, #tpu.memory_space<vmem>>, %arg5: memref<8x1xf32, #tpu.memory_space<vmem>>, %arg6: memref<1x8x128xf32, #tpu.memory_space<vmem>>) attributes {dimension_semantics = [#tpu.dimension_semantics<parallel>], iteration_bounds = array<i64: 2>, scalar_prefetch = 0 : i64, scratch_operands = 0 : i64, tpu.core_type = #tpu.core_type<tc>, window_params = [{transform_indices = @transform_0, window_bounds = array<i64: 1, 4, 128>}, {pipeline_mode = #tpu.pipeline_mode<synchronous>, transform_indices = @transform_1, window_bounds = array<i64: 8, 36>}, {pipeline_mode = #tpu.pipeline_mode<synchronous>, transform_indices = @transform_2, window_bounds = array<i64: 8, 1>}, {pipeline_mode = #tpu.pipeline_mode<synchronous>, transform_indices = @transform_3, window_bounds = array<i64: 8, 72>}, {pipeline_mode = #tpu.pipeline_mode<synchronous>, transform_indices = @transform_4, window_bounds = array<i64: 8, 1>}, {transform_indices = @transform_5, window_bounds = array<i64: 1, 8, 128>}]} {
    %c0 = arith.constant 0 : index
    %c0_0 = arith.constant 0 : index
    %c0_1 = arith.constant 0 : index
    %0 = vector.load %arg1[%c0, %c0_0, %c0_1] : memref<1x4x128xf32, #tpu.memory_space<vmem>>, vector<1x4x128xf32>
    %1 = vector.shape_cast %0 : vector<1x4x128xf32> to vector<4x128xf32>
    %2 = arith.truncf %1 : vector<4x128xf32> to vector<4x128xbf16>
    %3 = tpu.iota {dimensions = array<i32: 1>} : vector<1x128xi32>
    %c128_i32 = arith.constant 128 : i32
    %c0_i32 = arith.constant 0 : i32
    %4 = arith.cmpi eq, %c128_i32, %c0_i32 : i32
    %c1_i32 = arith.constant 1 : i32
    %5 = arith.select %4, %c1_i32, %c128_i32 : i32
    %6 = vector.broadcast %5 : i32 to vector<1x128xi32>
    %7 = arith.remsi %3, %6 : vector<1x128xi32>
    %c0_i32_2 = arith.constant 0 : i32
    %8 = vector.broadcast %c0_i32_2 : i32 to vector<1x128xi32>
    %9 = arith.cmpi ne, %7, %8 : vector<1x128xi32>
    %c0_i32_3 = arith.constant 0 : i32
    %10 = vector.broadcast %c0_i32_3 : i32 to vector<1x128xi32>
    %11 = arith.cmpi slt, %7, %10 : vector<1x128xi32>
    %c0_i32_4 = arith.constant 0 : i32
    %12 = arith.cmpi slt, %5, %c0_i32_4 : i32
    %13 = vector.broadcast %12 : i1 to vector<1x128xi1>
    %14 = vector.broadcast %13 : vector<1x128xi1> to vector<1x128xi1>
    %15 = arith.xori %11, %14 : vector<1x128xi1>
    %16 = arith.andi %15, %9 : vector<1x128xi1>
    %17 = vector.broadcast %5 : i32 to vector<1x128xi32>
    %18 = arith.addi %7, %17 : vector<1x128xi32>
    %19 = arith.select %16, %18, %7 : vector<1x128xi1>, vector<1x128xi32>
    %20 = vector.extract_strided_slice %2 {offsets = [0, 124], sizes = [4, 4], strides = [1, 1]} : vector<4x128xbf16> to vector<4x4xbf16>
    %21 = vector.extract_strided_slice %2 {offsets = [0, 0], sizes = [4, 124], strides = [1, 1]} : vector<4x128xbf16> to vector<4x124xbf16>
    %22 = tpu.concatenate %20, %21 in 1 : vector<4x4xbf16>, vector<4x124xbf16> -> vector<4x128xbf16>
    %c4_i32 = arith.constant 4 : i32
    %23 = vector.broadcast %c4_i32 : i32 to vector<1x128xi32>
    %24 = arith.cmpi sge, %19, %23 : vector<1x128xi32>
    %cst = arith.constant 0.000000e+00 : bf16
    %25 = vector.shape_cast %24 : vector<1x128xi1> to vector<1x128xi1>
    %26 = vector.broadcast %25 : vector<1x128xi1> to vector<4x128xi1>
    %27 = vector.broadcast %cst : bf16 to vector<4x128xbf16>
    %28 = arith.select %26, %22, %27 : vector<4x128xi1>, vector<4x128xbf16>
    %29 = vector.extract_strided_slice %2 {offsets = [0, 125], sizes = [4, 3], strides = [1, 1]} : vector<4x128xbf16> to vector<4x3xbf16>
    %30 = vector.extract_strided_slice %2 {offsets = [0, 0], sizes = [4, 125], strides = [1, 1]} : vector<4x128xbf16> to vector<4x125xbf16>
    %31 = tpu.concatenate %29, %30 in 1 : vector<4x3xbf16>, vector<4x125xbf16> -> vector<4x128xbf16>
    %c3_i32 = arith.constant 3 : i32
    %32 = vector.broadcast %c3_i32 : i32 to vector<1x128xi32>
    %33 = arith.cmpi sge, %19, %32 : vector<1x128xi32>
    %cst_5 = arith.constant 0.000000e+00 : bf16
    %34 = vector.shape_cast %33 : vector<1x128xi1> to vector<1x128xi1>
    %35 = vector.broadcast %34 : vector<1x128xi1> to vector<4x128xi1>
    %36 = vector.broadcast %cst_5 : bf16 to vector<4x128xbf16>
    %37 = arith.select %35, %31, %36 : vector<4x128xi1>, vector<4x128xbf16>
    %38 = vector.extract_strided_slice %2 {offsets = [0, 126], sizes = [4, 2], strides = [1, 1]} : vector<4x128xbf16> to vector<4x2xbf16>
    %39 = vector.extract_strided_slice %2 {offsets = [0, 0], sizes = [4, 126], strides = [1, 1]} : vector<4x128xbf16> to vector<4x126xbf16>
    %40 = tpu.concatenate %38, %39 in 1 : vector<4x2xbf16>, vector<4x126xbf16> -> vector<4x128xbf16>
    %c2_i32 = arith.constant 2 : i32
    %41 = vector.broadcast %c2_i32 : i32 to vector<1x128xi32>
    %42 = arith.cmpi sge, %19, %41 : vector<1x128xi32>
    %cst_6 = arith.constant 0.000000e+00 : bf16
    %43 = vector.shape_cast %42 : vector<1x128xi1> to vector<1x128xi1>
    %44 = vector.broadcast %43 : vector<1x128xi1> to vector<4x128xi1>
    %45 = vector.broadcast %cst_6 : bf16 to vector<4x128xbf16>
    %46 = arith.select %44, %40, %45 : vector<4x128xi1>, vector<4x128xbf16>
    %47 = vector.extract_strided_slice %2 {offsets = [0, 127], sizes = [4, 1], strides = [1, 1]} : vector<4x128xbf16> to vector<4x1xbf16>
    %48 = vector.extract_strided_slice %2 {offsets = [0, 0], sizes = [4, 127], strides = [1, 1]} : vector<4x128xbf16> to vector<4x127xbf16>
    %49 = tpu.concatenate %47, %48 in 1 : vector<4x1xbf16>, vector<4x127xbf16> -> vector<4x128xbf16>
    %c1_i32_7 = arith.constant 1 : i32
    %50 = vector.broadcast %c1_i32_7 : i32 to vector<1x128xi32>
    %51 = arith.cmpi sge, %19, %50 : vector<1x128xi32>
    %cst_8 = arith.constant 0.000000e+00 : bf16
    %52 = vector.shape_cast %51 : vector<1x128xi1> to vector<1x128xi1>
    %53 = vector.broadcast %52 : vector<1x128xi1> to vector<4x128xi1>
    %54 = vector.broadcast %cst_8 : bf16 to vector<4x128xbf16>
    %55 = arith.select %53, %49, %54 : vector<4x128xi1>, vector<4x128xbf16>
    %56 = vector.extract_strided_slice %2 {offsets = [0, 1], sizes = [4, 127], strides = [1, 1]} : vector<4x128xbf16> to vector<4x127xbf16>
    %57 = vector.extract_strided_slice %2 {offsets = [0, 0], sizes = [4, 1], strides = [1, 1]} : vector<4x128xbf16> to vector<4x1xbf16>
    %58 = tpu.concatenate %56, %57 in 1 : vector<4x127xbf16>, vector<4x1xbf16> -> vector<4x128xbf16>
    %c127_i32 = arith.constant 127 : i32
    %59 = vector.broadcast %c127_i32 : i32 to vector<1x128xi32>
    %60 = arith.cmpi slt, %19, %59 : vector<1x128xi32>
    %cst_9 = arith.constant 0.000000e+00 : bf16
    %61 = vector.shape_cast %60 : vector<1x128xi1> to vector<1x128xi1>
    %62 = vector.broadcast %61 : vector<1x128xi1> to vector<4x128xi1>
    %63 = vector.broadcast %cst_9 : bf16 to vector<4x128xbf16>
    %64 = arith.select %62, %58, %63 : vector<4x128xi1>, vector<4x128xbf16>
    %65 = vector.extract_strided_slice %2 {offsets = [0, 2], sizes = [4, 126], strides = [1, 1]} : vector<4x128xbf16> to vector<4x126xbf16>
    %66 = vector.extract_strided_slice %2 {offsets = [0, 0], sizes = [4, 2], strides = [1, 1]} : vector<4x128xbf16> to vector<4x2xbf16>
    %67 = tpu.concatenate %65, %66 in 1 : vector<4x126xbf16>, vector<4x2xbf16> -> vector<4x128xbf16>
    %c126_i32 = arith.constant 126 : i32
    %68 = vector.broadcast %c126_i32 : i32 to vector<1x128xi32>
    %69 = arith.cmpi slt, %19, %68 : vector<1x128xi32>
    %cst_10 = arith.constant 0.000000e+00 : bf16
    %70 = vector.shape_cast %69 : vector<1x128xi1> to vector<1x128xi1>
    %71 = vector.broadcast %70 : vector<1x128xi1> to vector<4x128xi1>
    %72 = vector.broadcast %cst_10 : bf16 to vector<4x128xbf16>
    %73 = arith.select %71, %67, %72 : vector<4x128xi1>, vector<4x128xbf16>
    %74 = vector.extract_strided_slice %2 {offsets = [0, 3], sizes = [4, 125], strides = [1, 1]} : vector<4x128xbf16> to vector<4x125xbf16>
    %75 = vector.extract_strided_slice %2 {offsets = [0, 0], sizes = [4, 3], strides = [1, 1]} : vector<4x128xbf16> to vector<4x3xbf16>
    %76 = tpu.concatenate %74, %75 in 1 : vector<4x125xbf16>, vector<4x3xbf16> -> vector<4x128xbf16>
    %c125_i32 = arith.constant 125 : i32
    %77 = vector.broadcast %c125_i32 : i32 to vector<1x128xi32>
    %78 = arith.cmpi slt, %19, %77 : vector<1x128xi32>
    %cst_11 = arith.constant 0.000000e+00 : bf16
    %79 = vector.shape_cast %78 : vector<1x128xi1> to vector<1x128xi1>
    %80 = vector.broadcast %79 : vector<1x128xi1> to vector<4x128xi1>
    %81 = vector.broadcast %cst_11 : bf16 to vector<4x128xbf16>
    %82 = arith.select %80, %76, %81 : vector<4x128xi1>, vector<4x128xbf16>
    %83 = vector.extract_strided_slice %2 {offsets = [0, 4], sizes = [4, 124], strides = [1, 1]} : vector<4x128xbf16> to vector<4x124xbf16>
    %84 = vector.extract_strided_slice %2 {offsets = [0, 0], sizes = [4, 4], strides = [1, 1]} : vector<4x128xbf16> to vector<4x4xbf16>
    %85 = tpu.concatenate %83, %84 in 1 : vector<4x124xbf16>, vector<4x4xbf16> -> vector<4x128xbf16>
    %c124_i32 = arith.constant 124 : i32
    %86 = vector.broadcast %c124_i32 : i32 to vector<1x128xi32>
    %87 = arith.cmpi slt, %19, %86 : vector<1x128xi32>
    %cst_12 = arith.constant 0.000000e+00 : bf16
    %88 = vector.shape_cast %87 : vector<1x128xi1> to vector<1x128xi1>
    %89 = vector.broadcast %88 : vector<1x128xi1> to vector<4x128xi1>
    %90 = vector.broadcast %cst_12 : bf16 to vector<4x128xbf16>
    %91 = arith.select %89, %85, %90 : vector<4x128xi1>, vector<4x128xbf16>
    %92 = tpu.concatenate %28, %37, %46, %55, %2, %64, %73, %82, %91 in 0 : vector<4x128xbf16>, vector<4x128xbf16>, vector<4x128xbf16>, vector<4x128xbf16>, vector<4x128xbf16>, vector<4x128xbf16>, vector<4x128xbf16>, vector<4x128xbf16>, vector<4x128xbf16> -> vector<36x128xbf16>
    %c0_13 = arith.constant 0 : index
    %c0_14 = arith.constant 0 : index
    %93 = vector.load %arg2[%c0_13, %c0_14] : memref<8x36xbf16, #tpu.memory_space<vmem>>, vector<8x36xbf16>
    %cst_15 = arith.constant dense<0.000000e+00> : vector<8x128xf32>
    %94 = tpu.matmul %93, %92, %cst_15 {dimension_numbers = #tpu.dot_dimension_numbers<[1], [0], [0], [1], [0, 0, 1, 1], [], []>} : vector<8x36xbf16>, vector<36x128xbf16>, vector<8x128xf32> -> vector<8x128xf32>
    %c0_16 = arith.constant 0 : index
    %c0_17 = arith.constant 0 : index
    %95 = vector.load %arg3[%c0_16, %c0_17] : memref<8x1xf32, #tpu.memory_space<vmem>>, vector<8x1xf32>
    %96 = vector.broadcast %95 : vector<8x1xf32> to vector<8x128xf32>
    %97 = arith.addf %94, %96 : vector<8x128xf32>
    %cst_18 = arith.constant 0.000000e+00 : f32
    %98 = vector.broadcast %cst_18 : f32 to vector<8x128xf32>
    %99 = arith.maximumf %97, %98 : vector<8x128xf32>
    %100 = arith.truncf %99 : vector<8x128xf32> to vector<8x128xbf16>
    %101 = vector.extract_strided_slice %100 {offsets = [0, 124], sizes = [8, 4], strides = [1, 1]} : vector<8x128xbf16> to vector<8x4xbf16>
    %102 = vector.extract_strided_slice %100 {offsets = [0, 0], sizes = [8, 124], strides = [1, 1]} : vector<8x128xbf16> to vector<8x124xbf16>
    %103 = tpu.concatenate %101, %102 in 1 : vector<8x4xbf16>, vector<8x124xbf16> -> vector<8x128xbf16>
    %c4_i32_19 = arith.constant 4 : i32
    %104 = vector.broadcast %c4_i32_19 : i32 to vector<1x128xi32>
    %105 = arith.cmpi sge, %19, %104 : vector<1x128xi32>
    %cst_20 = arith.constant 0.000000e+00 : bf16
    %106 = vector.shape_cast %105 : vector<1x128xi1> to vector<1x128xi1>
    %107 = vector.broadcast %106 : vector<1x128xi1> to vector<8x128xi1>
    %108 = vector.broadcast %cst_20 : bf16 to vector<8x128xbf16>
    %109 = arith.select %107, %103, %108 : vector<8x128xi1>, vector<8x128xbf16>
    %110 = vector.extract_strided_slice %100 {offsets = [0, 125], sizes = [8, 3], strides = [1, 1]} : vector<8x128xbf16> to vector<8x3xbf16>
    %111 = vector.extract_strided_slice %100 {offsets = [0, 0], sizes = [8, 125], strides = [1, 1]} : vector<8x128xbf16> to vector<8x125xbf16>
    %112 = tpu.concatenate %110, %111 in 1 : vector<8x3xbf16>, vector<8x125xbf16> -> vector<8x128xbf16>
    %c3_i32_21 = arith.constant 3 : i32
    %113 = vector.broadcast %c3_i32_21 : i32 to vector<1x128xi32>
    %114 = arith.cmpi sge, %19, %113 : vector<1x128xi32>
    %cst_22 = arith.constant 0.000000e+00 : bf16
    %115 = vector.shape_cast %114 : vector<1x128xi1> to vector<1x128xi1>
    %116 = vector.broadcast %115 : vector<1x128xi1> to vector<8x128xi1>
    %117 = vector.broadcast %cst_22 : bf16 to vector<8x128xbf16>
    %118 = arith.select %116, %112, %117 : vector<8x128xi1>, vector<8x128xbf16>
    %119 = vector.extract_strided_slice %100 {offsets = [0, 126], sizes = [8, 2], strides = [1, 1]} : vector<8x128xbf16> to vector<8x2xbf16>
    %120 = vector.extract_strided_slice %100 {offsets = [0, 0], sizes = [8, 126], strides = [1, 1]} : vector<8x128xbf16> to vector<8x126xbf16>
    %121 = tpu.concatenate %119, %120 in 1 : vector<8x2xbf16>, vector<8x126xbf16> -> vector<8x128xbf16>
    %c2_i32_23 = arith.constant 2 : i32
    %122 = vector.broadcast %c2_i32_23 : i32 to vector<1x128xi32>
    %123 = arith.cmpi sge, %19, %122 : vector<1x128xi32>
    %cst_24 = arith.constant 0.000000e+00 : bf16
    %124 = vector.shape_cast %123 : vector<1x128xi1> to vector<1x128xi1>
    %125 = vector.broadcast %124 : vector<1x128xi1> to vector<8x128xi1>
    %126 = vector.broadcast %cst_24 : bf16 to vector<8x128xbf16>
    %127 = arith.select %125, %121, %126 : vector<8x128xi1>, vector<8x128xbf16>
    %128 = vector.extract_strided_slice %100 {offsets = [0, 127], sizes = [8, 1], strides = [1, 1]} : vector<8x128xbf16> to vector<8x1xbf16>
    %129 = vector.extract_strided_slice %100 {offsets = [0, 0], sizes = [8, 127], strides = [1, 1]} : vector<8x128xbf16> to vector<8x127xbf16>
    %130 = tpu.concatenate %128, %129 in 1 : vector<8x1xbf16>, vector<8x127xbf16> -> vector<8x128xbf16>
    %c1_i32_25 = arith.constant 1 : i32
    %131 = vector.broadcast %c1_i32_25 : i32 to vector<1x128xi32>
    %132 = arith.cmpi sge, %19, %131 : vector<1x128xi32>
    %cst_26 = arith.constant 0.000000e+00 : bf16
    %133 = vector.shape_cast %132 : vector<1x128xi1> to vector<1x128xi1>
    %134 = vector.broadcast %133 : vector<1x128xi1> to vector<8x128xi1>
    %135 = vector.broadcast %cst_26 : bf16 to vector<8x128xbf16>
    %136 = arith.select %134, %130, %135 : vector<8x128xi1>, vector<8x128xbf16>
    %137 = vector.extract_strided_slice %100 {offsets = [0, 1], sizes = [8, 127], strides = [1, 1]} : vector<8x128xbf16> to vector<8x127xbf16>
    %138 = vector.extract_strided_slice %100 {offsets = [0, 0], sizes = [8, 1], strides = [1, 1]} : vector<8x128xbf16> to vector<8x1xbf16>
    %139 = tpu.concatenate %137, %138 in 1 : vector<8x127xbf16>, vector<8x1xbf16> -> vector<8x128xbf16>
    %c127_i32_27 = arith.constant 127 : i32
    %140 = vector.broadcast %c127_i32_27 : i32 to vector<1x128xi32>
    %141 = arith.cmpi slt, %19, %140 : vector<1x128xi32>
    %cst_28 = arith.constant 0.000000e+00 : bf16
    %142 = vector.shape_cast %141 : vector<1x128xi1> to vector<1x128xi1>
    %143 = vector.broadcast %142 : vector<1x128xi1> to vector<8x128xi1>
    %144 = vector.broadcast %cst_28 : bf16 to vector<8x128xbf16>
    %145 = arith.select %143, %139, %144 : vector<8x128xi1>, vector<8x128xbf16>
    %146 = vector.extract_strided_slice %100 {offsets = [0, 2], sizes = [8, 126], strides = [1, 1]} : vector<8x128xbf16> to vector<8x126xbf16>
    %147 = vector.extract_strided_slice %100 {offsets = [0, 0], sizes = [8, 2], strides = [1, 1]} : vector<8x128xbf16> to vector<8x2xbf16>
    %148 = tpu.concatenate %146, %147 in 1 : vector<8x126xbf16>, vector<8x2xbf16> -> vector<8x128xbf16>
    %c126_i32_29 = arith.constant 126 : i32
    %149 = vector.broadcast %c126_i32_29 : i32 to vector<1x128xi32>
    %150 = arith.cmpi slt, %19, %149 : vector<1x128xi32>
    %cst_30 = arith.constant 0.000000e+00 : bf16
    %151 = vector.shape_cast %150 : vector<1x128xi1> to vector<1x128xi1>
    %152 = vector.broadcast %151 : vector<1x128xi1> to vector<8x128xi1>
    %153 = vector.broadcast %cst_30 : bf16 to vector<8x128xbf16>
    %154 = arith.select %152, %148, %153 : vector<8x128xi1>, vector<8x128xbf16>
    %155 = vector.extract_strided_slice %100 {offsets = [0, 3], sizes = [8, 125], strides = [1, 1]} : vector<8x128xbf16> to vector<8x125xbf16>
    %156 = vector.extract_strided_slice %100 {offsets = [0, 0], sizes = [8, 3], strides = [1, 1]} : vector<8x128xbf16> to vector<8x3xbf16>
    %157 = tpu.concatenate %155, %156 in 1 : vector<8x125xbf16>, vector<8x3xbf16> -> vector<8x128xbf16>
    %c125_i32_31 = arith.constant 125 : i32
    %158 = vector.broadcast %c125_i32_31 : i32 to vector<1x128xi32>
    %159 = arith.cmpi slt, %19, %158 : vector<1x128xi32>
    %cst_32 = arith.constant 0.000000e+00 : bf16
    %160 = vector.shape_cast %159 : vector<1x128xi1> to vector<1x128xi1>
    %161 = vector.broadcast %160 : vector<1x128xi1> to vector<8x128xi1>
    %162 = vector.broadcast %cst_32 : bf16 to vector<8x128xbf16>
    %163 = arith.select %161, %157, %162 : vector<8x128xi1>, vector<8x128xbf16>
    %164 = vector.extract_strided_slice %100 {offsets = [0, 4], sizes = [8, 124], strides = [1, 1]} : vector<8x128xbf16> to vector<8x124xbf16>
    %165 = vector.extract_strided_slice %100 {offsets = [0, 0], sizes = [8, 4], strides = [1, 1]} : vector<8x128xbf16> to vector<8x4xbf16>
    %166 = tpu.concatenate %164, %165 in 1 : vector<8x124xbf16>, vector<8x4xbf16> -> vector<8x128xbf16>
    %c124_i32_33 = arith.constant 124 : i32
    %167 = vector.broadcast %c124_i32_33 : i32 to vector<1x128xi32>
    %168 = arith.cmpi slt, %19, %167 : vector<1x128xi32>
    %cst_34 = arith.constant 0.000000e+00 : bf16
    %169 = vector.shape_cast %168 : vector<1x128xi1> to vector<1x128xi1>
    %170 = vector.broadcast %169 : vector<1x128xi1> to vector<8x128xi1>
    %171 = vector.broadcast %cst_34 : bf16 to vector<8x128xbf16>
    %172 = arith.select %170, %166, %171 : vector<8x128xi1>, vector<8x128xbf16>
    %173 = tpu.concatenate %109, %118, %127, %136, %100, %145, %154, %163, %172 in 0 : vector<8x128xbf16>, vector<8x128xbf16>, vector<8x128xbf16>, vector<8x128xbf16>, vector<8x128xbf16>, vector<8x128xbf16>, vector<8x128xbf16>, vector<8x128xbf16>, vector<8x128xbf16> -> vector<72x128xbf16>
    %c0_35 = arith.constant 0 : index
    %c0_36 = arith.constant 0 : index
    %174 = vector.load %arg4[%c0_35, %c0_36] : memref<8x72xbf16, #tpu.memory_space<vmem>>, vector<8x72xbf16>
    %cst_37 = arith.constant dense<0.000000e+00> : vector<8x128xf32>
    %175 = tpu.matmul %174, %173, %cst_37 {dimension_numbers = #tpu.dot_dimension_numbers<[1], [0], [0], [1], [0, 0, 1, 1], [], []>} : vector<8x72xbf16>, vector<72x128xbf16>, vector<8x128xf32> -> vector<8x128xf32>
    %c0_38 = arith.constant 0 : index
    %c0_39 = arith.constant 0 : index
    %176 = vector.load %arg5[%c0_38, %c0_39] : memref<8x1xf32, #tpu.memory_space<vmem>>, vector<8x1xf32>
    %177 = vector.broadcast %176 : vector<8x1xf32> to vector<8x128xf32>
    %178 = arith.addf %175, %177 : vector<8x128xf32>
    %cst_40 = arith.constant 0.000000e+00 : f32
    %179 = vector.broadcast %cst_40 : f32 to vector<8x128xf32>
    %180 = arith.maximumf %178, %179 : vector<8x128xf32>
    %c0_41 = arith.constant 0 : index
    %c0_42 = arith.constant 0 : index
    %c0_43 = arith.constant 0 : index
    %181 = vector.load %arg6[%c0_41, %c0_42, %c0_43] : memref<1x8x128xf32, #tpu.memory_space<vmem>>, vector<1x8x128xf32>
    %182 = vector.shape_cast %181 : vector<1x8x128xf32> to vector<8x128xf32>
    %183 = vector.shape_cast %180 : vector<8x128xf32> to vector<1x8x128xf32>
    tpu.vector_store %arg6[%c0_41, %c0_42, %c0_43], %183 {strides = array<i32>} : memref<1x8x128xf32, #tpu.memory_space<vmem>>, vector<1x8x128xf32>,
    return
  }
  func.func @transform_0(%arg0: i32) -> (i32, i32, i32) {
    %c0_i32 = arith.constant 0 : i32
    %c0_i32_0 = arith.constant 0 : i32
    %c0_i32_1 = arith.constant 0 : i32
    return %arg0, %c0_i32, %c0_i32_0 : i32, i32, i32
  }
  func.func @transform_1(%arg0: i32) -> (i32, i32) {
    %c0_i32 = arith.constant 0 : i32
    %c0_i32_0 = arith.constant 0 : i32
    %c0_i32_1 = arith.constant 0 : i32
    return %c0_i32, %c0_i32_0 : i32, i32
  }
  func.func @transform_2(%arg0: i32) -> (i32, i32) {
    %c0_i32 = arith.constant 0 : i32
    %c0_i32_0 = arith.constant 0 : i32
    %c0_i32_1 = arith.constant 0 : i32
    return %c0_i32, %c0_i32_0 : i32, i32
  }
  func.func @transform_3(%arg0: i32) -> (i32, i32) {
    %c0_i32 = arith.constant 0 : i32
    %c0_i32_0 = arith.constant 0 : i32
    %c0_i32_1 = arith.constant 0 : i32
    return %c0_i32, %c0_i32_0 : i32, i32
  }
  func.func @transform_4(%arg0: i32) -> (i32, i32) {
    %c0_i32 = arith.constant 0 : i32
    %c0_i32_0 = arith.constant 0 : i32
    %c0_i32_1 = arith.constant 0 : i32
    return %c0_i32, %c0_i32_0 : i32, i32
  }
  func.func @transform_5(%arg0: i32) -> (i32, i32, i32) {
    %c0_i32 = arith.constant 0 : i32
    %c0_i32_0 = arith.constant 0 : i32
    %c0_i32_1 = arith.constant 0 : i32
    return %arg0, %c0_i32, %c0_i32_0 : i32, i32, i32
  }
}

</mosaic_0001>

<llo_original>
// kernel: tpu_custom_call.1
$region0: #{tpu_custom_call.1}
  #allocation0 [shape = 'u32[]', space=smem, size = 0x4, offset = 0x4, fixed_abs, tag = 'smem constant byte address 0x4 - core index']
  #allocation1 [shape = 'u32[144,128]{1,0:T(1,128)}', space=vmem, size = 0x12000, scoped, tag = 'internal scratch']
  %s0 = inlined_call_operand.vmem [shape: f32[2,4,128], index: 0, kind: input, shape index: {}]
  %s1 = inlined_call_operand.vmem [shape: bf16[8,36], index: 1, kind: input, shape index: {}]
  %s2 = inlined_call_operand.vmem [shape: f32[8,1], index: 2, kind: input, shape index: {}]
  %s3 = inlined_call_operand.vmem [shape: bf16[8,72], index: 3, kind: input, shape index: {}]
  %s4 = inlined_call_operand.vmem [shape: f32[8,1], index: 4, kind: input, shape index: {}]
  %s5 = inlined_call_operand.hbm [shape: f32[2,8,128], index: 5, kind: output, shape index: {}]
  %s6 = sld [smem:[#allocation0]]
  $region53: #{tpu_custom_call.1} parent=0
    _
  %s8 = ssub.s32 1, %s6
  %s9 = scalar_select 0, %s8, %s6
  $region1: #{tpu_custom_call.1} parent=0
    #allocation2 [shape = 'u8[8192]{0}', space=vmem, size = 0x2000, scoped, tag = 'output window, operand 0']
    #allocation3 [shape = 's32[2]{0}', space=sflag, size = 0x8, scoped, tag = 'scoped memory for tpu_custom_call.1']
    %10 = vsyncpa [#allocation3], 0
    %s11 = scalar_lea.sflag [#allocation3], 1
    %12 = vsyncpa %s11, 0
    loop: start=0, step=1, limit=4
    $region2: #{tpu_custom_call.1} parent=1 // loop_pre_header
      _
    $region3: #{tpu_custom_call.1} parent=1 // loop_header
      %s14 = sphi 0, %s18
      %p15 = scmp.ge.s32.totalorder %s14, 4
      %s24 = sphi 0, %s26
      %s27 = sphi 0, %s24
      %s28 = sphi 0, %s27
      %s44 = sphi 0, %s28
      %s48 = sphi 0, %s48
      %s50 = sphi 0, %s48
      %s51 = sphi 0, %s50
      %s65 = sphi 0, %s51
      %s69 = sphi 0, %s69
      %s71 = sphi 0, %s69
      %s72 = sphi 0, %s71
      %s86 = sphi 0, %s72
      %s90 = sphi 0, %s90
      %s92 = sphi 0, %s90
      %s93 = sphi 0, %s92
      %s107 = sphi 0, %s93
      %s111 = sphi 0, %s111
      %s113 = sphi 0, %s111
      %s114 = sphi 0, %s113
      %s128 = sphi 0, %s114
      %s134 = sphi 0, %s136
      %s137 = sphi 0, %s134
      %s138 = sphi 0, %s137
      %s154 = sphi 0, %s138
    $region4: #{tpu_custom_call.1} parent=1 // loop_header_branch
      %17 = sbr.rel (%p15) target = $region8
    $region5: #{tpu_custom_call.1} parent=1 // loop_body
      %s19 = ssub.s32 %s14, 1
      %s20 = ssub.s32 %s14, 2
      %s21 = sadd.s32 %s14, 1
      %s22 = ssub.s32 %s14, %s21
      %p23 = scmp.eq.s32.totalorder %s22, 0
      %s25 = sadd.s32 %s24, 1
      %s26 = scalar_select %p23, %s24, %s25
      %p29 = pneg %p23
      %p30 = scmp.eq.s32.totalorder %s14, 1
      %p31 = por %p29, %p30
      %p32 = scmp.ne.s32.totalorder %s24, %s27
      %p33 = scmp.eq.s32.totalorder %s14, 0
      %p34 = por %p32, %p33
      %p35 = scmp.ne.s32.totalorder %s24, %s27
      %p36 = scmp.eq.s32.totalorder %s19, 1
      %p37 = por %p35, %p36
      %p38 = scmp.ne.s32.totalorder %s27, %s28
      %p39 = scmp.eq.s32.totalorder %s19, 0
      %p40 = por %p38, %p39
      %p41 = scmp.ne.s32.totalorder %s27, %s28
      %p42 = scmp.eq.s32.totalorder %s20, 1
      %p43 = por %p41, %p42
      %p45 = scmp.ne.s32.totalorder %s28, %s44
      %p46 = scmp.eq.s32.totalorder %s20, 0
      %p47 = por %p45, %p46
      %s49 = sadd.s32 %s48, 1
      %p52 = scmp.eq.s32.totalorder %s14, 1
      %p53 = scmp.ne.s32.totalorder %s48, %s50
      %p54 = scmp.eq.s32.totalorder %s14, 0
      %p55 = por %p53, %p54
      %p56 = scmp.ne.s32.totalorder %s48, %s50
      %p57 = scmp.eq.s32.totalorder %s19, 1
      %p58 = por %p56, %p57
      %p59 = scmp.ne.s32.totalorder %s50, %s51
      %p60 = scmp.eq.s32.totalorder %s19, 0
      %p61 = por %p59, %p60
      %p62 = scmp.ne.s32.totalorder %s50, %s51
      %p63 = scmp.eq.s32.totalorder %s20, 1
      %p64 = por %p62, %p63
      %p66 = scmp.ne.s32.totalorder %s51, %s65
      %p67 = scmp.eq.s32.totalorder %s20, 0
      %p68 = por %p66, %p67
      %s70 = sadd.s32 %s69, 1
      %p73 = scmp.eq.s32.totalorder %s14, 1
      %p74 = scmp.ne.s32.totalorder %s69, %s71
      %p75 = scmp.eq.s32.totalorder %s14, 0
      %p76 = por %p74, %p75
      %p77 = scmp.ne.s32.totalorder %s69, %s71
      %p78 = scmp.eq.s32.totalorder %s19, 1
      %p79 = por %p77, %p78
      %p80 = scmp.ne.s32.totalorder %s71, %s72
      %p81 = scmp.eq.s32.totalorder %s19, 0
      %p82 = por %p80, %p81
      %p83 = scmp.ne.s32.totalorder %s71, %s72
      %p84 = scmp.eq.s32.totalorder %s20, 1
      %p85 = por %p83, %p84
      %p87 = scmp.ne.s32.totalorder %s72, %s86
      %p88 = scmp.eq.s32.totalorder %s20, 0
      %p89 = por %p87, %p88
      %s91 = sadd.s32 %s90, 1
      %p94 = scmp.eq.s32.totalorder %s14, 1
      %p95 = scmp.ne.s32.totalorder %s90, %s92
      %p96 = scmp.eq.s32.totalorder %s14, 0
      %p97 = por %p95, %p96
      %p98 = scmp.ne.s32.totalorder %s90, %s92
      %p99 = scmp.eq.s32.totalorder %s19, 1
      %p100 = por %p98, %p99
      %p101 = scmp.ne.s32.totalorder %s92, %s93
      %p102 = scmp.eq.s32.totalorder %s19, 0
      %p103 = por %p101, %p102
      %p104 = scmp.ne.s32.totalorder %s92, %s93
      %p105 = scmp.eq.s32.totalorder %s20, 1
      %p106 = por %p104, %p105
      %p108 = scmp.ne.s32.totalorder %s93, %s107
      %p109 = scmp.eq.s32.totalorder %s20, 0
      %p110 = por %p108, %p109
      %s112 = sadd.s32 %s111, 1
      %p115 = scmp.eq.s32.totalorder %s14, 1
      %p116 = scmp.ne.s32.totalorder %s111, %s113
      %p117 = scmp.eq.s32.totalorder %s14, 0
      %p118 = por %p116, %p117
      %p119 = scmp.ne.s32.totalorder %s111, %s113
      %p120 = scmp.eq.s32.totalorder %s19, 1
      %p121 = por %p119, %p120
      %p122 = scmp.ne.s32.totalorder %s113, %s114
      %p123 = scmp.eq.s32.totalorder %s19, 0
      %p124 = por %p122, %p123
      %p125 = scmp.ne.s32.totalorder %s113, %s114
      %p126 = scmp.eq.s32.totalorder %s20, 1
      %p127 = por %p125, %p126
      %p129 = scmp.ne.s32.totalorder %s114, %s128
      %p130 = scmp.eq.s32.totalorder %s20, 0
      %p131 = por %p129, %p130
      %s132 = ssub.s32 %s14, %s21
      %p133 = scmp.eq.s32.totalorder %s132, 0
      %s135 = sadd.s32 %s134, 1
      %s136 = scalar_select %p133, %s134, %s135
      %p139 = pneg %p133
      %p140 = scmp.eq.s32.totalorder %s14, 1
      %p141 = por %p139, %p140
      %p142 = scmp.ne.s32.totalorder %s134, %s137
      %p143 = scmp.eq.s32.totalorder %s14, 0
      %p144 = por %p142, %p143
      %p145 = scmp.ne.s32.totalorder %s134, %s137
      %p146 = scmp.eq.s32.totalorder %s19, 1
      %p147 = por %p145, %p146
      %p148 = scmp.ne.s32.totalorder %s137, %s138
      %p149 = scmp.eq.s32.totalorder %s19, 0
      %p150 = por %p148, %p149
      %p151 = scmp.ne.s32.totalorder %s137, %s138
      %p152 = scmp.eq.s32.totalorder %s20, 1
      %p153 = por %p151, %p152
      %p155 = scmp.ne.s32.totalorder %s138, %s154
      %p156 = scmp.eq.s32.totalorder %s20, 0
      %p157 = por %p155, %p156
      %p158 = scmp.le.s32.totalorder 1, %s14
      %p159 = scmp.lt.s32.totalorder %s14, 3
      %p160 = pnand %p158, %p159
      %p161 = pneg %p160
      // Predicated region
      $region9: #{tpu_custom_call.1} parent=5 // pred_check
        _
      $region10: #{tpu_custom_call.1} parent=5 // pred_check_branch
        %163 = sbr.rel (%p160) target = $region12
      $region11: #{tpu_custom_call.1} parent=5 // pred_region
        %s164 = ssub.s32 %s14, 1
        // Predicated region
        $region13: #{tpu_custom_call.1} parent=11 // pred_check
          %p165 = pneg %p61
        $region14: #{tpu_custom_call.1} parent=11 // pred_check_branch
          %167 = sbr.rel (%p165) target = $region16
        $region15: #{tpu_custom_call.1} parent=11 // pred_region
          _
        $region16: #{tpu_custom_call.1} parent=11 // pred_fallthru
          _
        // Predicated region
        $region17: #{tpu_custom_call.1} parent=11 // pred_check
          %p168 = pneg %p82
        $region18: #{tpu_custom_call.1} parent=11 // pred_check_branch
          %170 = sbr.rel (%p168) target = $region20
        $region19: #{tpu_custom_call.1} parent=11 // pred_region
          _
        $region20: #{tpu_custom_call.1} parent=11 // pred_fallthru
          _
        // Predicated region
        $region21: #{tpu_custom_call.1} parent=11 // pred_check
          %p171 = pneg %p103
        $region22: #{tpu_custom_call.1} parent=11 // pred_check_branch
          %173 = sbr.rel (%p171) target = $region24
        $region23: #{tpu_custom_call.1} parent=11 // pred_region
          _
        $region24: #{tpu_custom_call.1} parent=11 // pred_fallthru
          _
        // Predicated region
        $region25: #{tpu_custom_call.1} parent=11 // pred_check
          %p174 = pneg %p124
        $region26: #{tpu_custom_call.1} parent=11 // pred_check_branch
          %176 = sbr.rel (%p174) target = $region28
        $region27: #{tpu_custom_call.1} parent=11 // pred_region
          _
        $region28: #{tpu_custom_call.1} parent=11 // pred_fallthru
          _
      $region12: #{tpu_custom_call.1} parent=5 // pred_fallthru
        _
      %p177 = scmp.lt.s32.totalorder %s14, 2
      // Predicated region
      $region29: #{tpu_custom_call.1} parent=5 // pred_check
        %p178 = pneg %p177
      $region30: #{tpu_custom_call.1} parent=5 // pred_check_branch
        %180 = sbr.rel (%p178) target = $region32
      $region31: #{tpu_custom_call.1} parent=5 // pred_region
        // Predicated region
        $region33: #{tpu_custom_call.1} parent=31 // pred_check
          %p181 = pneg %p34
        $region34: #{tpu_custom_call.1} parent=31 // pred_check_branch
          %183 = sbr.rel (%p181) target = $region36
        $region35: #{tpu_custom_call.1} parent=31 // pred_region
          %p184 = scmp.lt.s32.totalorder %s14, 1
          %s185 = scalar_select %p184, %s14, 1
          %s186 = smul.addr %s185, 4
          %s187 = scalar_lea.vmem %s0, %s186
        $region36: #{tpu_custom_call.1} parent=31 // pred_fallthru
          _
      $region32: #{tpu_custom_call.1} parent=5 // pred_fallthru
        _
      %p188 = scmp.le.s32.totalorder 1, %s14
      %p189 = scmp.lt.s32.totalorder %s14, 3
      %p190 = pnand %p188, %p189
      %p191 = pneg %p190
      // Predicated region
      $region37: #{tpu_custom_call.1} parent=5 // pred_check
        _
      $region38: #{tpu_custom_call.1} parent=5 // pred_check_branch
        %193 = sbr.rel (%p190) target = $region40
      $region39: #{tpu_custom_call.1} parent=5 // pred_region
        %s194 = ssub.s32 %s14, 1
        %p195 = scmp.lt.s32.totalorder %s19, 1
        %s196 = scalar_select %p195, %s19, 1
        %s197 = smul.addr %s196, 4
        %s198 = scalar_lea.vmem %s0, %s197
        %p199 = pneg %p40
        %p200 = pneg %p37
        %p201 = pneg %p61
        %p202 = pneg %p58
        %p203 = pneg %p82
        %p204 = pneg %p79
        %p205 = pneg %p103
        %p206 = pneg %p100
        %p207 = pneg %p124
        %p208 = pneg %p121
        %p209 = pneg %p150
        %p210 = pneg %p147
        %s211 = sand.u32 %s137, 1
        %s212 = scalar_lea.sflag [#allocation3], %s211
        %s213 = sand.u32 %s137, 1
        %s214 = smul.addr %s213, 8
        %s215 = scalar_lea.vmem [#allocation2], %s214
        %p216 = scmp.lt.s32.totalorder %s19, 1
        %s217 = scalar_select %p216, %s19, 1
        %s218 = smul.addr %s217, 4
        %s219 = scalar_lea.vmem %s0, %s218
        %v221 = vld [vmem:[%s219] sm:$0xf]
        %v222 = vpack.c.bf16 %v221, %v221
        %v223 = vlaneseq
        %v224 = vand.u32 %v223, 127
        %vm225 = vcmp.lt.s32.totalorder %v224, 0
        %v226 = vsub.s32 0, %v224
        %v227 = vsel %vm225, %v226, %v224
        %v228 = vshrl.u32 %v227, 7
        %v229 = vand.u32 %v227, 127
        %v230 = vsub.s32 0, %v229
        %v231 = vsel %vm225, %v230, %v229
        %vm232 = vcmp.ne.s32.totalorder %v231, 0
        %vm233 = vcmp.lt.s32.totalorder %v231, 0
        %vm234 = vmand %vm233, %vm232
        %v235 = vadd.s32 %v231, 128
        %v236 = vsel %vm234, %v235, %v231
        %238 = vrot.lane.b32.xlu0 %v222, 4
        %v239 = vpop.permute.xlu0 %238
        %vm242 = vcmp.ge.s32.totalorder %v236, 4
        %v243 = vsel %vm242, 1, 0
        %vm244 = vcmp.eq.s32.totalorder %v243, 1
        %vm245 = vmpackc.low %vm244, %vm244
        %v246 = vsel %vm245, %v239, 0
        %247 = vrot.lane.b32.xlu0 %v222, 3
        %v248 = vpop.permute.xlu0 %247
        %vm251 = vcmp.ge.s32.totalorder %v236, 3
        %v252 = vsel %vm251, 1, 0
        %vm253 = vcmp.eq.s32.totalorder %v252, 1
        %vm254 = vmpackc.low %vm253, %vm253
        %v255 = vsel %vm254, %v248, 0
        %256 = vrot.lane.b32.xlu0 %v222, 2
        %v257 = vpop.permute.xlu0 %256
        %vm260 = vcmp.ge.s32.totalorder %v236, 2
        %v261 = vsel %vm260, 1, 0
        %vm262 = vcmp.eq.s32.totalorder %v261, 1
        %vm263 = vmpackc.low %vm262, %vm262
        %v264 = vsel %vm263, %v257, 0
        %265 = vrot.lane.b32.xlu0 %v222, 1
        %v266 = vpop.permute.xlu0 %265
        %vm269 = vcmp.ge.s32.totalorder %v236, 1
        %v270 = vsel %vm269, 1, 0
        %vm271 = vcmp.eq.s32.totalorder %v270, 1
        %vm272 = vmpackc.low %vm271, %vm271
        %v273 = vsel %vm272, %v266, 0
        %274 = vrot.lane.b32.xlu0 %v222, 127
        %v275 = vpop.permute.xlu0 %274
        %vm278 = vcmp.lt.s32.totalorder %v236, 127
        %v279 = vsel %vm278, 1, 0
        %vm280 = vcmp.eq.s32.totalorder %v279, 1
        %vm281 = vmpackc.low %vm280, %vm280
        %v282 = vsel %vm281, %v275, 0
        %283 = vrot.lane.b32.xlu0 %v222, 126
        %v284 = vpop.permute.xlu0 %283
        %vm287 = vcmp.lt.s32.totalorder %v236, 126
        %v288 = vsel %vm287, 1, 0
        %vm289 = vcmp.eq.s32.totalorder %v288, 1
        %vm290 = vmpackc.low %vm289, %vm289
        %v291 = vsel %vm290, %v284, 0
        %292 = vrot.lane.b32.xlu0 %v222, 125
        %v293 = vpop.permute.xlu0 %292
        %vm296 = vcmp.lt.s32.totalorder %v236, 125
        %v297 = vsel %vm296, 1, 0
        %vm298 = vcmp.eq.s32.totalorder %v297, 1
        %vm299 = vmpackc.low %vm298, %vm298
        %v300 = vsel %vm299, %v293, 0
        %301 = vrot.lane.b32.xlu0 %v222, 124
        %v302 = vpop.permute.xlu0 %301
        %vm305 = vcmp.lt.s32.totalorder %v236, 124
        %v306 = vsel %vm305, 1, 0
        %vm307 = vcmp.eq.s32.totalorder %v306, 1
        %vm308 = vmpackc.low %vm307, %vm307
        %v309 = vsel %vm308, %v302, 0
        %v311 = vrot.slane %v255, 6
        %v313 = vrot.slane %v264, 4
        %v315 = vrot.slane %v273, 2
        %v317 = vrot.slane %v282, 6
        %v319 = vrot.slane %v291, 4
        %v321 = vrot.slane %v300, 2
        %vm322 = vcmask 1041408
        %v325 = vsel %vm322, %v246, %v311
        %vm326 = vcmask 1043456
        %v328 = vsel %vm326, %v325, %v313
        %vm329 = vcmask 1045504
        %v331 = vsel %vm329, %v328, %v315
        %v335 = vsel %vm322, %v222, %v317
        %v337 = vsel %vm326, %v335, %v319
        %v339 = vsel %vm329, %v337, %v321
        %v341 = vld [vmem:[%s1] sm:$0xf]
        %v342 = vld [vmem:[%s2] sm:$0xff]
        %344 = vset.pattern.permute.xlu0 0
        %345 = vperm.xlu0 %344, %v342
        %v346 = vpop.permute.xlu0 %345
        %vm348 = vcmask 293888
        %v350 = vsel %vm348, %v341, 0
        %v353 = vsel %vm322, %v309, 0
        %355 = vmatprep.subr.bf16.mxu0 0
        %356 = vmatpush1.bf16.msra.mxu0 0
        %357 = vmatprep.subr.bf16.mxu0 0
        %358 = vmatpush1.bf16.msra.mxu0 0
        %359 = vmatprep.subr.bf16.mxu0 0
        %360 = vmatpush1.bf16.msra.mxu0 0
        %361 = vmatprep.subr.bf16.mxu0 0
        %362 = vmatpush1.bf16.msra.mxu0 0
        %363 = vmatprep.subr.bf16.mxu0 0
        %364 = vmatpush1.bf16.msra.mxu0 0
        %365 = vmatprep.subr.bf16.mxu0 0
        %366 = vmatpush1.bf16.msra.mxu0 %v353
        %367 = vmatprep.subr.bf16.mxu0 0
        %368 = vmatpush1.bf16.msra.mxu0 %v339
        %369 = vmatprep.subr.bf16.mxu0 0
        %370 = vmatpush1.bf16.msra.mxu0 %v331
        %371 = vmatprep.subr.bf16.mxu0 0
        %372 = vmatpush2.bf16.msra.mxu0 0
        %373 = vmatprep.subr.bf16.mxu0 0
        %374 = vmatpush2.bf16.msra.mxu0 0
        %375 = vmatprep.subr.bf16.mxu0 0
        %376 = vmatpush2.bf16.msra.mxu0 0
        %377 = vmatprep.subr.bf16.mxu0 0
        %378 = vmatpush2.bf16.msra.mxu0 0
        %379 = vmatprep.subr.bf16.mxu0 0
        %380 = vmatpush2.bf16.msra.mxu0 0
        %381 = vmatprep.subr.bf16.mxu0 0
        %382 = vmatpush2.bf16.msra.mxu0 0
        %383 = vmatprep.subr.bf16.mxu0 0
        %384 = vmatpush2.bf16.msra.mxu0 0
        %385 = vmatprep.subr.bf16.mxu0 0
        %386 = vmatpush2.bf16.msra.mxu0 0
        %387 = vmatprep.mubr.bf16.mxu0 0
        %388 = vmatmul.mubr.bf16.gmra.mxu0 %v350
        %v389 = vpop.f32.mrf.mxu0
        %v390 = vadd.f32 %v346, %v389
        %v391 = vpop.f32.mrf.mxu0
        %v392 = vpop.f32.mrf.mxu0
        %v393 = vpop.f32.mrf.mxu0
        %394 = vdwg.mxu0
        %v395 = vmax.f32 %v390, 0.0
        %v396 = vpack.c.bf16 %v395, %v395
        %398 = vrot.lane.b32.xlu0 %v396, 4
        %v399 = vpop.permute.xlu0 %398
        %v402 = vsel %vm245, %v399, 0
        %403 = vrot.lane.b32.xlu0 %v396, 3
        %v404 = vpop.permute.xlu0 %403
        %v407 = vsel %vm254, %v404, 0
        %408 = vrot.lane.b32.xlu0 %v396, 2
        %v409 = vpop.permute.xlu0 %408
        %v412 = vsel %vm263, %v409, 0
        %413 = vrot.lane.b32.xlu0 %v396, 1
        %v414 = vpop.permute.xlu0 %413
        %v417 = vsel %vm272, %v414, 0
        %418 = vrot.lane.b32.xlu0 %v396, 127
        %v419 = vpop.permute.xlu0 %418
        %v422 = vsel %vm281, %v419, 0
        %423 = vrot.lane.b32.xlu0 %v396, 126
        %v424 = vpop.permute.xlu0 %423
        %v427 = vsel %vm290, %v424, 0
        %428 = vrot.lane.b32.xlu0 %v396, 125
        %v429 = vpop.permute.xlu0 %428
        %v432 = vsel %vm299, %v429, 0
        %433 = vrot.lane.b32.xlu0 %v396, 124
        %v434 = vpop.permute.xlu0 %433
        %v437 = vsel %vm308, %v434, 0
        %v439 = vrot.slane %v407, 4
        %v441 = vrot.slane %v417, 4
        %v443 = vrot.slane %v422, 4
        %v445 = vrot.slane %v432, 4
        %v448 = vsel %vm326, %v402, %v439
        %v452 = vsel %vm326, %v412, %v441
        %v456 = vsel %vm326, %v396, %v443
        %v460 = vsel %vm326, %v427, %v445
        %v462 = vld [vmem:[%s3] sm:$0xf]
        %v463 = vld [vmem:[%s4] sm:$0xff]
        %465 = vset.pattern.permute.xlu0 0
        %466 = vperm.xlu0 %465, %v463
        %v467 = vpop.permute.xlu0 %466
        %vm469 = vcmask 588800
        %v471 = vsel %vm469, %v462, 0
        %v474 = vsel %vm326, %v437, 0
        %476 = vmatprep.subr.bf16.mxu0 0
        %477 = vmatpush1.bf16.msra.mxu0 0
        %478 = vmatprep.subr.bf16.mxu0 0
        %479 = vmatpush1.bf16.msra.mxu0 0
        %480 = vmatprep.subr.bf16.mxu0 0
        %481 = vmatpush1.bf16.msra.mxu0 0
        %482 = vmatprep.subr.bf16.mxu0 0
        %483 = vmatpush1.bf16.msra.mxu0 %v474
        %484 = vmatprep.subr.bf16.mxu0 0
        %485 = vmatpush1.bf16.msra.mxu0 %v460
        %486 = vmatprep.subr.bf16.mxu0 0
        %487 = vmatpush1.bf16.msra.mxu0 %v456
        %488 = vmatprep.subr.bf16.mxu0 0
        %489 = vmatpush1.bf16.msra.mxu0 %v452
        %490 = vmatprep.subr.bf16.mxu0 0
        %491 = vmatpush1.bf16.msra.mxu0 %v448
        %492 = vmatprep.subr.bf16.mxu0 0
        %493 = vmatpush2.bf16.msra.mxu0 0
        %494 = vmatprep.subr.bf16.mxu0 0
        %495 = vmatpush2.bf16.msra.mxu0 0
        %496 = vmatprep.subr.bf16.mxu0 0
        %497 = vmatpush2.bf16.msra.mxu0 0
        %498 = vmatprep.subr.bf16.mxu0 0
        %499 = vmatpush2.bf16.msra.mxu0 0
        %500 = vmatprep.subr.bf16.mxu0 0
        %501 = vmatpush2.bf16.msra.mxu0 0
        %502 = vmatprep.subr.bf16.mxu0 0
        %503 = vmatpush2.bf16.msra.mxu0 0
        %504 = vmatprep.subr.bf16.mxu0 0
        %505 = vmatpush2.bf16.msra.mxu0 0
        %506 = vmatprep.subr.bf16.mxu0 0
        %507 = vmatpush2.bf16.msra.mxu0 0
        %508 = vmatprep.mubr.bf16.mxu0 0
        %509 = vmatmul.mubr.bf16.gmra.mxu0 %v471
        %v510 = vpop.f32.mrf.mxu0
        %v511 = vadd.f32 %v467, %v510
        %v512 = vpop.f32.mrf.mxu0
        %v513 = vpop.f32.mrf.mxu0
        %v514 = vpop.f32.mrf.mxu0
        %515 = vdwg.mxu0
        %v516 = vmax.f32 %v511, 0.0
        %517 = vst [vmem:[%s215] sm:$0xff] %v516
        %s518 = sand.u32 %s137, 1
        %s519 = scalar_lea.sflag [#allocation3], %s518
        %s520 = sand.u32 %s137, 1
        %s521 = smul.addr %s520, 8
        %s522 = scalar_lea.vmem [#allocation2], %s521
        // Predicated region
        $region41: #{tpu_custom_call.1} parent=39 // pred_check
          %p523 = pneg %p147
        $region42: #{tpu_custom_call.1} parent=39 // pred_check_branch
          %525 = sbr.rel (%p523) target = $region44
        $region43: #{tpu_custom_call.1} parent=39 // pred_region
          %s527 = ssub.s32 128, 128
          %528 = vsyncadd %s519, %s527
          %s529 = smul.addr %s19, 128
          %s530 = scalar_lea.hbm %s5, %s529
          %s532 = sshll.u32 %s522, 4
          %s533 = int_to_ptr.vmem [resolvable:$true] %s532
          %535 = dma.vmem_to_hbm [thread:$0]  %s533, 128, %s530, %s519
        $region44: #{tpu_custom_call.1} parent=39 // pred_fallthru
          _
      $region40: #{tpu_custom_call.1} parent=5 // pred_fallthru
        _
      %p536 = scmp.le.s32.totalorder 2, %s14
      // Predicated region
      $region45: #{tpu_custom_call.1} parent=5 // pred_check
        %p537 = pneg %p536
      $region46: #{tpu_custom_call.1} parent=5 // pred_check_branch
        %539 = sbr.rel (%p537) target = $region48
      $region47: #{tpu_custom_call.1} parent=5 // pred_region
        %s540 = ssub.s32 %s14, 2
        // Predicated region
        $region49: #{tpu_custom_call.1} parent=47 // pred_check
          %p541 = pneg %p153
        $region50: #{tpu_custom_call.1} parent=47 // pred_check_branch
          %543 = sbr.rel (%p541) target = $region52
        $region51: #{tpu_custom_call.1} parent=47 // pred_region
          %s544 = sand.u32 %s138, 1
          %s545 = scalar_lea.sflag [#allocation3], %s544
          %s546 = sand.u32 %s138, 1
          %s547 = smul.addr %s546, 8
          %s548 = scalar_lea.vmem [#allocation2], %s547
          %549 = dma.done %s545, 128
        $region52: #{tpu_custom_call.1} parent=47 // pred_fallthru
          _
      $region48: #{tpu_custom_call.1} parent=5 // pred_fallthru
        _
    $region6: #{tpu_custom_call.1} parent=1 // loop_footer
      %s18 = sadd.s32 1, %s14
    $region7: #{tpu_custom_call.1} parent=1 // loop_footer_branch
      %13 = sbr.rel target = $region3
    $region8: #{tpu_custom_call.1} parent=1 // loop_exit
      _
    %550 = vsyncpa [#allocation3], 1
    %s551 = scalar_lea.sflag [#allocation3], 1
    %552 = vsyncpa %s551, 1

</llo_original>
